<compile_context>
chip_gen: v5e
topology: v5e:2x2
jax: 0.10.0
libtpu: 0.0.40
codegen_flags: <defaults>
</compile_context>

<pallas_src>
import math
import numpy as np
import jax
import jax.numpy as jnp
from jax.experimental import pallas as pl
from jax.experimental.pallas import tpu as pltpu

_LN_EPS = 1e-5


# ---------------------------------------------------------------------------
# Kernel: fused (patch gather) + LayerNorm + Linear on one row tile.
# ---------------------------------------------------------------------------
def _merge_ln_linear_kernel(x_ref, w_ref, b_ref, o_ref):
    # x_ref: (tile_oh, k, ow, k*C)   raw input rows, kh along dim 1
    # w_ref: (k*k*C, P)              gamma-folded, permuted, lane-padded weight
    # b_ref: (1, P)                  beta @ W^T, lane-padded (f32)
    # o_ref: (tile_oh*ow, P)         lane-dense output tile
    tile_oh, k, ow, ckw = x_ref.shape
    rows = tile_oh * ow
    d = k * ckw
    inv_d = 1.0 / float(d)

    x = x_ref[...].astype(jnp.float32)                    # (tile_oh, k, ow, ckw)
    # One slab per kernel row kh; feature order inside a slab is kw*C + c.
    xs = [x[:, i, :, :].reshape(rows, ckw) for i in range(k)]

    mean = sum(jnp.sum(v, axis=-1, keepdims=True) for v in xs) * inv_d
    xcs = [v - mean for v in xs]
    var = sum(jnp.sum(v * v, axis=-1, keepdims=True) for v in xcs) * inv_d
    inv = jax.lax.rsqrt(var + _LN_EPS)

    w = w_ref[...]
    mm_dtype = w.dtype  # bf16 weights -> bf16 MXU operands; f32 stays f32
    acc = None
    for i, xc in enumerate(xcs):
        xn = (xc * inv).astype(mm_dtype)
        part = jnp.dot(xn, w[i * ckw:(i + 1) * ckw, :],
                       preferred_element_type=jnp.float32)
        acc = part if acc is None else acc + part
    acc = acc + b_ref[...].astype(jnp.float32)
    o_ref[...] = acc.astype(o_ref.dtype)


def _pick_tile_oh(oh, ow, target_rows):
    """Largest tile_oh dividing oh with ~target_rows merged rows per step and
    (tile_oh*ow) % 8 == 0 (sublane-aligned output block)."""
    cand = max(1, min(oh, max(1, target_rows // max(ow, 1))))
    for t in range(cand, 0, -1):
        if oh % t == 0 and ((t * ow) % 8 == 0 or t == oh):
            return t
    return oh  # full extent always satisfies the layout rule


# ---------------------------------------------------------------------------
# PatchMerging forward (kernel_size=2, stride=kernel_size, dilation=1).
# ---------------------------------------------------------------------------
def patch_merging_forward(x, input_size, params, *, kernel_size=2, stride=None,
                          padding="corner", dilation=1, target_rows=1024):
    """x: (B, H*W, C_in). Returns ((B, oh*ow, C_out), (oh, ow))."""
    if stride is None:
        stride = kernel_size
    k = kernel_size
    # TODO(synk): overlapping unfold (stride != kernel_size) or dilation != 1
    # has no free-reshape fusion; only the module's default path is implemented.
    assert stride == kernel_size and dilation == 1, "only s==k, dilation==1"
    assert padding in ("corner", "same")

    B, L, C = x.shape
    H, W = input_size
    assert L == H * W, "input feature has wrong size"
    x = x.reshape(B, H, W, C)                              # NHWC, free reshape

    # AdaptivePadding
    pad_h = max(math.ceil(H / stride) * stride - H, 0)
    pad_w = max(math.ceil(W / stride) * stride - W, 0)
    if pad_h > 0 or pad_w > 0:
        if padding == "corner":
            pads = ((0, 0), (0, pad_h), (0, pad_w), (0, 0))
        else:  # "same"
            pads = ((0, 0), (pad_h // 2, pad_h - pad_h // 2),
                    (pad_w // 2, pad_w - pad_w // 2), (0, 0))
        x = jnp.pad(x, pads)
    Hp, Wp = H + pad_h, W + pad_w
    oh, ow = Hp // k, Wp // k

    # ---- trace-time weight preparation (tiny, one-off) ----------------------
    gamma = params["ln_weight"].astype(jnp.float32)        # (D,)
    beta = params["ln_bias"].astype(jnp.float32)           # (D,)
    w_pt = params["reduction_weight"]                      # (C_out, D), torch layout
    D = k * k * C
    C_out = w_pt.shape[0]
    assert w_pt.shape == (C_out, D) and gamma.shape == (D,) and beta.shape == (D,)
    P = ((C_out + 127) // 128) * 128                       # lane-dense output width

    w_fold = gamma[:, None] * w_pt.T.astype(jnp.float32)   # (D, C_out), unfold order
    bias = beta @ w_pt.T.astype(jnp.float32)               # (C_out,)
    # permute rows: unfold order c*k*k + i*k + j  ->  kernel order (i*k + j)*C + c
    perm = np.empty((D,), dtype=np.int32)
    for i in range(k):
        for j in range(k):
            for c in range(C):
                perm[(i * k + j) * C + c] = c * k * k + i * k + j
    w_fold = w_fold[perm, :]
    if P != C_out:
        w_fold = jnp.pad(w_fold, ((0, 0), (0, P - C_out)))
        bias = jnp.pad(bias, (0, P - C_out))
    bias = bias.reshape(1, P).astype(jnp.float32)
    w_kernel = w_fold.astype(jnp.bfloat16 if x.dtype == jnp.bfloat16
                             else jnp.float32)

    # ---- pallas call ---------------------------------------------------------
    x5 = x.reshape(B, oh, k, ow, k * C)                    # free reshape, no copy
    tile_oh = _pick_tile_oh(oh, ow, target_rows)
    n_tiles = oh // tile_oh
    rows_per_tile = tile_oh * ow

    out = pl.pallas_call(
        _merge_ln_linear_kernel,
        out_shape=jax.ShapeDtypeStruct((B, oh * ow, P), x.dtype),
        grid_spec=pltpu.PrefetchScalarGridSpec(
            num_scalar_prefetch=0,
            grid=(B, n_tiles),
            in_specs=[
                pl.BlockSpec((None, tile_oh, k, ow, k * C),
                             lambda b, i: (b, i, 0, 0, 0)),
                pl.BlockSpec((D, P), lambda b, i: (0, 0)),
                pl.BlockSpec((1, P), lambda b, i: (0, 0)),
            ],
            out_specs=pl.BlockSpec((None, rows_per_tile, P),
                                   lambda b, i: (b, i, 0)),
        ),
        compiler_params=pltpu.CompilerParams(
            dimension_semantics=("parallel", "parallel"),
            vmem_limit_bytes=32 * 1024 * 1024,
        ),
    )(x5, w_kernel, bias)

    y = out[:, :, :C_out] if P != C_out else out
    return y, (oh, ow)


# ---------------------------------------------------------------------------
# Pure-JAX reference (mirrors the PyTorch module exactly).
# ---------------------------------------------------------------------------
def _reference_forward(x, input_size, params, k=2):
    B, L, C = x.shape
    H, W = input_size
    xi = x.reshape(B, H, W, C)
    oh, ow = math.ceil(H / k), math.ceil(W / k)
    xi = jnp.pad(xi, ((0, 0), (0, oh * k - H), (0, ow * k - W), (0, 0)))
    x6 = xi.reshape(B, oh, k, ow, k, C)
    feat = x6.transpose(0, 1, 3, 5, 2, 4).reshape(B, oh * ow, C * k * k)
    g, be, w = params["ln_weight"], params["ln_bias"], params["reduction_weight"]
    mean = jnp.mean(feat, -1, keepdims=True)
    var = jnp.mean((feat - mean) ** 2, -1, keepdims=True)
    xn = (feat - mean) / jnp.sqrt(var + _LN_EPS) * g + be
    return xn @ w.T, (oh, ow)


if __name__ == "__main__":
    # Module config: in_channels=4, out_channels=8, kernel_size=2 (Swin-style).
    B, C_in, H, W = 2, 4, 16, 16
    C_out, k = 8, 2
    D = k * k * C_in

    key = jax.random.PRNGKey(0)
    kx, kx2, kw_, kg, kb = jax.random.split(key, 5)
    x = jax.random.normal(kx, (B, H * W, C_in), dtype=jnp.float32)
    params = {
        "ln_weight": (1.0 + 0.1 * jax.random.normal(kg, (D,))).astype(jnp.float32),
        "ln_bias": (0.1 * jax.random.normal(kb, (D,))).astype(jnp.float32),
        "reduction_weight": (jax.random.normal(kw_, (C_out, D))
                             / math.sqrt(D)).astype(jnp.float32),
    }

    y, out_size = patch_merging_forward(x, (H, W), params, kernel_size=k)
    y = jax.block_until_ready(y)
    assert y.shape == (B, (H // k) * (W // k), C_out), y.shape
    assert out_size == (H // k, W // k), out_size
    y_ref, _ = _reference_forward(x, (H, W), params, k=k)
    err = float(jnp.max(jnp.abs(y - y_ref)))
    assert jnp.allclose(y, y_ref, atol=1e-4, rtol=1e-4), err

    # Odd spatial size -> exercises AdaptivePadding('corner').
    H2 = W2 = 15
    x2 = jax.random.normal(kx2, (B, H2 * W2, C_in), dtype=jnp.float32)
    y2, out_size2 = patch_merging_forward(x2, (H2, W2), params, kernel_size=k)
    y2 = jax.block_until_ready(y2)
    assert out_size2 == (8, 8), out_size2
    y2_ref, _ = _reference_forward(x2, (H2, W2), params, k=k)
    err2 = float(jnp.max(jnp.abs(y2 - y2_ref)))
    assert jnp.allclose(y2, y2_ref, atol=1e-4, rtol=1e-4), err2

    print("KERNEL_OK")
</pallas_src>

<mosaic_0001>
module attributes {stable_mosaic.version = 11 : i64} {
  func.func @_merge_ln_linear_kernel(%arg0: i32, %arg1: i32, %arg2: memref<1x8x2x8x8xf32, #tpu.memory_space<vmem>>, %arg3: memref<16x128xf32, #tpu.memory_space<vmem>>, %arg4: memref<1x128xf32, #tpu.memory_space<vmem>>, %arg5: memref<1x64x128xf32, #tpu.memory_space<vmem>>) attributes {dimension_semantics = [#tpu.dimension_semantics<parallel>, #tpu.dimension_semantics<parallel>], iteration_bounds = array<i64: 2, 1>, scalar_prefetch = 0 : i64, scratch_operands = 0 : i64, tpu.core_type = #tpu.core_type<tc>, window_params = [{transform_indices = @transform_0, window_bounds = array<i64: 1, 8, 2, 8, 8>}, {pipeline_mode = #tpu.pipeline_mode<synchronous>, transform_indices = @transform_1, window_bounds = array<i64: 16, 128>}, {pipeline_mode = #tpu.pipeline_mode<synchronous>, transform_indices = @transform_2, window_bounds = array<i64: 1, 128>}, {transform_indices = @transform_3, window_bounds = array<i64: 1, 64, 128>}]} {
    %c0 = arith.constant 0 : index
    %c0_0 = arith.constant 0 : index
    %c0_1 = arith.constant 0 : index
    %c0_2 = arith.constant 0 : index
    %c0_3 = arith.constant 0 : index
    %0 = vector.load %arg2[%c0, %c0_0, %c0_1, %c0_2, %c0_3] : memref<1x8x2x8x8xf32, #tpu.memory_space<vmem>>, vector<1x8x2x8x8xf32>
    %1 = vector.shape_cast %0 : vector<1x8x2x8x8xf32> to vector<8x2x8x8xf32>
    %2 = vector.extract_strided_slice %1 {offsets = [0, 0, 0, 0], sizes = [8, 1, 8, 8], strides = [1, 1, 1, 1]} : vector<8x2x8x8xf32> to vector<8x1x8x8xf32>
    %3 = vector.shape_cast %2 : vector<8x1x8x8xf32> to vector<8x8x8xf32>
    %4 = vector.shape_cast %3 : vector<8x8x8xf32> to vector<64x8xf32>
    %5 = vector.extract_strided_slice %1 {offsets = [0, 1, 0, 0], sizes = [8, 1, 8, 8], strides = [1, 1, 1, 1]} : vector<8x2x8x8xf32> to vector<8x1x8x8xf32>
    %6 = vector.shape_cast %5 : vector<8x1x8x8xf32> to vector<8x8x8xf32>
    %7 = vector.shape_cast %6 : vector<8x8x8xf32> to vector<64x8xf32>
    %cst = arith.constant dense<0.000000e+00> : vector<64xf32>
    %8 = vector.multi_reduction <add>, %4, %cst [1] : vector<64x8xf32> to vector<64xf32>
    %9 = vector.shape_cast %8 : vector<64xf32> to vector<64x1xf32>
    %cst_4 = arith.constant 0.000000e+00 : f32
    %10 = vector.broadcast %cst_4 : f32 to vector<64x1xf32>
    %11 = arith.addf %10, %9 : vector<64x1xf32>
    %cst_5 = arith.constant dense<0.000000e+00> : vector<64xf32>
    %12 = vector.multi_reduction <add>, %7, %cst_5 [1] : vector<64x8xf32> to vector<64xf32>
    %13 = vector.shape_cast %12 : vector<64xf32> to vector<64x1xf32>
    %14 = arith.addf %11, %13 : vector<64x1xf32>
    %cst_6 = arith.constant 6.250000e-02 : f32
    %15 = vector.broadcast %cst_6 : f32 to vector<64x1xf32>
    %16 = arith.mulf %14, %15 : vector<64x1xf32>
    %17 = vector.broadcast %16 : vector<64x1xf32> to vector<64x8xf32>
    %18 = arith.subf %4, %17 : vector<64x8xf32>
    %19 = vector.broadcast %16 : vector<64x1xf32> to vector<64x8xf32>
    %20 = arith.subf %7, %19 : vector<64x8xf32>
    %21 = arith.mulf %18, %18 : vector<64x8xf32>
    %cst_7 = arith.constant dense<0.000000e+00> : vector<64xf32>
    %22 = vector.multi_reduction <add>, %21, %cst_7 [1] : vector<64x8xf32> to vector<64xf32>
    %23 = vector.shape_cast %22 : vector<64xf32> to vector<64x1xf32>
    %cst_8 = arith.constant 0.000000e+00 : f32
    %24 = vector.broadcast %cst_8 : f32 to vector<64x1xf32>
    %25 = arith.addf %24, %23 : vector<64x1xf32>
    %26 = arith.mulf %20, %20 : vector<64x8xf32>
    %cst_9 = arith.constant dense<0.000000e+00> : vector<64xf32>
    %27 = vector.multi_reduction <add>, %26, %cst_9 [1] : vector<64x8xf32> to vector<64xf32>
    %28 = vector.shape_cast %27 : vector<64xf32> to vector<64x1xf32>
    %29 = arith.addf %25, %28 : vector<64x1xf32>
    %cst_10 = arith.constant 6.250000e-02 : f32
    %30 = vector.broadcast %cst_10 : f32 to vector<64x1xf32>
    %31 = arith.mulf %29, %30 : vector<64x1xf32>
    %cst_11 = arith.constant 9.99999974E-6 : f32
    %32 = vector.broadcast %cst_11 : f32 to vector<64x1xf32>
    %33 = arith.addf %31, %32 : vector<64x1xf32>
    %34 = math.rsqrt %33 : vector<64x1xf32>
    %c0_12 = arith.constant 0 : index
    %c0_13 = arith.constant 0 : index
    %35 = vector.load %arg3[%c0_12, %c0_13] : memref<16x128xf32, #tpu.memory_space<vmem>>, vector<16x128xf32>
    %36 = vector.broadcast %34 : vector<64x1xf32> to vector<64x8xf32>
    %37 = arith.mulf %18, %36 : vector<64x8xf32>
    %38 = vector.extract_strided_slice %35 {offsets = [0, 0], sizes = [8, 128], strides = [1, 1]} : vector<16x128xf32> to vector<8x128xf32>
    %cst_14 = arith.constant dense<0.000000e+00> : vector<64x128xf32>
    %39 = tpu.matmul %37, %38, %cst_14 {dimension_numbers = #tpu.dot_dimension_numbers<[1], [0], [0], [1], [0, 0, 1, 1], [], []>} : vector<64x8xf32>, vector<8x128xf32>, vector<64x128xf32> -> vector<64x128xf32>
    %40 = vector.broadcast %34 : vector<64x1xf32> to vector<64x8xf32>
    %41 = arith.mulf %20, %40 : vector<64x8xf32>
    %42 = vector.extract_strided_slice %35 {offsets = [8, 0], sizes = [8, 128], strides = [1, 1]} : vector<16x128xf32> to vector<8x128xf32>
    %cst_15 = arith.constant dense<0.000000e+00> : vector<64x128xf32>
    %43 = tpu.matmul %41, %42, %cst_15 {dimension_numbers = #tpu.dot_dimension_numbers<[1], [0], [0], [1], [0, 0, 1, 1], [], []>} : vector<64x8xf32>, vector<8x128xf32>, vector<64x128xf32> -> vector<64x128xf32>
    %44 = arith.addf %39, %43 : vector<64x128xf32>
    %c0_16 = arith.constant 0 : index
    %c0_17 = arith.constant 0 : index
    %45 = vector.load %arg4[%c0_16, %c0_17] : memref<1x128xf32, #tpu.memory_space<vmem>>, vector<1x128xf32>
    %46 = vector.broadcast %45 : vector<1x128xf32> to vector<64x128xf32>
    %47 = arith.addf %44, %46 : vector<64x128xf32>
    %c0_18 = arith.constant 0 : index
    %c0_19 = arith.constant 0 : index
    %c0_20 = arith.constant 0 : index
    %48 = vector.load %arg5[%c0_18, %c0_19, %c0_20] : memref<1x64x128xf32, #tpu.memory_space<vmem>>, vector<1x64x128xf32>
    %49 = vector.shape_cast %48 : vector<1x64x128xf32> to vector<64x128xf32>
    %50 = vector.shape_cast %47 : vector<64x128xf32> to vector<1x64x128xf32>
    tpu.vector_store %arg5[%c0_18, %c0_19, %c0_20], %50 {strides = array<i32>} : memref<1x64x128xf32, #tpu.memory_space<vmem>>, vector<1x64x128xf32>,
    return
  }
  func.func @transform_0(%arg0: i32, %arg1: i32) -> (i32, i32, i32, i32, i32) {
    %c0_i32 = arith.constant 0 : i32
    %c0_i32_0 = arith.constant 0 : i32
    %c0_i32_1 = arith.constant 0 : i32
    %c0_i32_2 = arith.constant 0 : i32
    return %arg0, %arg1, %c0_i32, %c0_i32_0, %c0_i32_1 : i32, i32, i32, i32, i32
  }
  func.func @transform_1(%arg0: i32, %arg1: i32) -> (i32, i32) {
    %c0_i32 = arith.constant 0 : i32
    %c0_i32_0 = arith.constant 0 : i32
    %c0_i32_1 = arith.constant 0 : i32
    return %c0_i32, %c0_i32_0 : i32, i32
  }
  func.func @transform_2(%arg0: i32, %arg1: i32) -> (i32, i32) {
    %c0_i32 = arith.constant 0 : i32
    %c0_i32_0 = arith.constant 0 : i32
    %c0_i32_1 = arith.constant 0 : i32
    return %c0_i32, %c0_i32_0 : i32, i32
  }
  func.func @transform_3(%arg0: i32, %arg1: i32) -> (i32, i32, i32) {
    %c0_i32 = arith.constant 0 : i32
    %c0_i32_0 = arith.constant 0 : i32
    return %arg0, %arg1, %c0_i32 : i32, i32, i32
  }
}

</mosaic_0001>

<llo_original>
// kernel: tpu_custom_call.1
$region0: #{tpu_custom_call.1}
  #allocation0 [shape = 'u32[]', space=smem, size = 0x4, offset = 0x4, fixed_abs, tag = 'smem constant byte address 0x4 - core index']
  #allocation1 [shape = 'u32[72,128]{1,0:T(1,128)}', space=vmem, size = 0x9000, scoped, tag = 'internal scratch']
  %s0 = inlined_call_operand.hbm [shape: f32[2,8,2,8,8], index: 0, kind: input, shape index: {}]
  %s1 = inlined_call_operand.hbm [shape: f32[16,128], index: 1, kind: input, shape index: {}]
  %s2 = inlined_call_operand.vmem [shape: f32[1,128], index: 2, kind: input, shape index: {}]
  %s3 = inlined_call_operand.hbm [shape: f32[2,64,128], index: 3, kind: output, shape index: {}]
  %s4 = sld [smem:[#allocation0]]
  $region53: #{tpu_custom_call.1} parent=0
    _
  %s6 = ssub.s32 1, %s4
  %s7 = scalar_select 0, %s6, %s4
  $region1: #{tpu_custom_call.1} parent=0
    #allocation2 [shape = 'u8[131072]{0}', space=vmem, size = 0x20000, scoped, tag = 'input window, operand 0']
    #allocation3 [shape = 's32[2]{0}', space=sflag, size = 0x8, scoped, tag = 'scoped memory for tpu_custom_call.1']
    #allocation4 [shape = 's32[2]{0}', space=sflag, size = 0x8, scoped, tag = 'scoped memory for tpu_custom_call.1']
    #allocation5 [shape = 'u8[8192]{0}', space=vmem, size = 0x2000, scoped, tag = 'input window, operand 1, single buffered']
    #allocation6 [shape = 's32[1]{0}', space=sflag, size = 0x4, scoped, tag = 'scoped memory for tpu_custom_call.1']
    #allocation7 [shape = 'u8[65536]{0}', space=vmem, size = 0x10000, scoped, tag = 'output window, operand 0']
    %8 = vsyncpa [#allocation3], 0
    %s9 = scalar_lea.sflag [#allocation3], 1
    %10 = vsyncpa %s9, 0
    %11 = vsyncpa [#allocation6], 0
    %12 = vsyncpa [#allocation4], 0
    %s13 = scalar_lea.sflag [#allocation4], 1
    %14 = vsyncpa %s13, 0
    loop: start=0, step=1, limit=4
    $region2: #{tpu_custom_call.1} parent=1 // loop_pre_header
      _
    $region3: #{tpu_custom_call.1} parent=1 // loop_header
      %s16 = sphi 0, %s20
      %p17 = scmp.ge.s32.totalorder %s16, 4
      %s23 = sphi 0, %s35
      %s24 = sphi 0, %s31
      %s25 = sphi 0, %s23
      %s26 = sphi 0, %s24
      %s27 = sphi 0, %s25
      %s28 = sphi 0, %s26
      %s40 = sphi 0, %s42
      %s43 = sphi 0, %s40
      %s44 = sphi 0, %s43
      %s60 = sphi 0, %s44
      %s64 = sphi 0, %s64
      %s66 = sphi 0, %s64
      %s67 = sphi 0, %s66
      %s81 = sphi 0, %s67
      %s85 = sphi 0, %s85
      %s87 = sphi 0, %s85
      %s88 = sphi 0, %s87
      %s102 = sphi 0, %s88
      %s110 = sphi 0, %s112
      %s113 = sphi 0, %s110
      %s114 = sphi 0, %s113
      %s130 = sphi 0, %s114
    $region4: #{tpu_custom_call.1} parent=1 // loop_header_branch
      %19 = sbr.rel (%p17) target = $region8
    $region5: #{tpu_custom_call.1} parent=1 // loop_body
      %s21 = ssub.s32 %s16, 1
      %s22 = ssub.s32 %s16, 2
      %s29 = sadd.s32 1, %s24
      %p30 = scmp.ge.s32.totalorder %s29, 1
      %s31 = scalar_select %p30, 0, %s29
      %s32 = sadd.s32 1, %s23
      %s33 = scalar_select %p30, %s32, %s23
      %p34 = scmp.ge.s32.totalorder %s33, 2
      %s35 = scalar_select %p34, 0, %s33
      %s36 = ssub.s32 %s23, %s35
      %s37 = ssub.s32 %s24, %s31
      %s38 = sor.u32 %s36, %s37
      %p39 = scmp.eq.s32.totalorder %s38, 0
      %s41 = sadd.s32 %s40, 1
      %s42 = scalar_select %p39, %s40, %s41
      %p45 = pneg %p39
      %p46 = scmp.eq.s32.totalorder %s16, 1
      %p47 = por %p45, %p46
      %p48 = scmp.ne.s32.totalorder %s40, %s43
      %p49 = scmp.eq.s32.totalorder %s16, 0
      %p50 = por %p48, %p49
      %p51 = scmp.ne.s32.totalorder %s40, %s43
      %p52 = scmp.eq.s32.totalorder %s21, 1
      %p53 = por %p51, %p52
      %p54 = scmp.ne.s32.totalorder %s43, %s44
      %p55 = scmp.eq.s32.totalorder %s21, 0
      %p56 = por %p54, %p55
      %p57 = scmp.ne.s32.totalorder %s43, %s44
      %p58 = scmp.eq.s32.totalorder %s22, 1
      %p59 = por %p57, %p58
      %p61 = scmp.ne.s32.totalorder %s44, %s60
      %p62 = scmp.eq.s32.totalorder %s22, 0
      %p63 = por %p61, %p62
      %s65 = sadd.s32 %s64, 1
      %p68 = scmp.eq.s32.totalorder %s16, 1
      %p69 = scmp.ne.s32.totalorder %s64, %s66
      %p70 = scmp.eq.s32.totalorder %s16, 0
      %p71 = por %p69, %p70
      %p72 = scmp.ne.s32.totalorder %s64, %s66
      %p73 = scmp.eq.s32.totalorder %s21, 1
      %p74 = por %p72, %p73
      %p75 = scmp.ne.s32.totalorder %s66, %s67
      %p76 = scmp.eq.s32.totalorder %s21, 0
      %p77 = por %p75, %p76
      %p78 = scmp.ne.s32.totalorder %s66, %s67
      %p79 = scmp.eq.s32.totalorder %s22, 1
      %p80 = por %p78, %p79
      %p82 = scmp.ne.s32.totalorder %s67, %s81
      %p83 = scmp.eq.s32.totalorder %s22, 0
      %p84 = por %p82, %p83
      %s86 = sadd.s32 %s85, 1
      %p89 = scmp.eq.s32.totalorder %s16, 1
      %p90 = scmp.ne.s32.totalorder %s85, %s87
      %p91 = scmp.eq.s32.totalorder %s16, 0
      %p92 = por %p90, %p91
      %p93 = scmp.ne.s32.totalorder %s85, %s87
      %p94 = scmp.eq.s32.totalorder %s21, 1
      %p95 = por %p93, %p94
      %p96 = scmp.ne.s32.totalorder %s87, %s88
      %p97 = scmp.eq.s32.totalorder %s21, 0
      %p98 = por %p96, %p97
      %p99 = scmp.ne.s32.totalorder %s87, %s88
      %p100 = scmp.eq.s32.totalorder %s22, 1
      %p101 = por %p99, %p100
      %p103 = scmp.ne.s32.totalorder %s88, %s102
      %p104 = scmp.eq.s32.totalorder %s22, 0
      %p105 = por %p103, %p104
      %s106 = ssub.s32 %s23, %s35
      %s107 = ssub.s32 %s24, %s31
      %s108 = sor.u32 %s106, %s107
      %p109 = scmp.eq.s32.totalorder %s108, 0
      %s111 = sadd.s32 %s110, 1
      %s112 = scalar_select %p109, %s110, %s111
      %p115 = pneg %p109
      %p116 = scmp.eq.s32.totalorder %s16, 1
      %p117 = por %p115, %p116
      %p118 = scmp.ne.s32.totalorder %s110, %s113
      %p119 = scmp.eq.s32.totalorder %s16, 0
      %p120 = por %p118, %p119
      %p121 = scmp.ne.s32.totalorder %s110, %s113
      %p122 = scmp.eq.s32.totalorder %s21, 1
      %p123 = por %p121, %p122
      %p124 = scmp.ne.s32.totalorder %s113, %s114
      %p125 = scmp.eq.s32.totalorder %s21, 0
      %p126 = por %p124, %p125
      %p127 = scmp.ne.s32.totalorder %s113, %s114
      %p128 = scmp.eq.s32.totalorder %s22, 1
      %p129 = por %p127, %p128
      %p131 = scmp.ne.s32.totalorder %s114, %s130
      %p132 = scmp.eq.s32.totalorder %s22, 0
      %p133 = por %p131, %p132
      %p134 = scmp.le.s32.totalorder 1, %s16
      %p135 = scmp.lt.s32.totalorder %s16, 3
      %p136 = pnand %p134, %p135
      %p137 = pneg %p136
      // Predicated region
      $region9: #{tpu_custom_call.1} parent=5 // pred_check
        _
      $region10: #{tpu_custom_call.1} parent=5 // pred_check_branch
        %139 = sbr.rel (%p136) target = $region12
      $region11: #{tpu_custom_call.1} parent=5 // pred_region
        %s140 = ssub.s32 %s16, 1
        // Predicated region
        $region13: #{tpu_custom_call.1} parent=11 // pred_check
          %p141 = pneg %p77
        $region14: #{tpu_custom_call.1} parent=11 // pred_check_branch
          %143 = sbr.rel (%p141) target = $region16
        $region15: #{tpu_custom_call.1} parent=11 // pred_region
          %145 = vsyncadd [#allocation6], 0
          %s146 = sshll.u32 %s1, 4
          %s147 = int_to_ptr.hbm [resolvable:$true] %s146
          %s148 = sshll.u32 [#allocation5], 4
          %s149 = int_to_ptr.vmem [resolvable:$true] %s148
          %154 = dma.hbm_to_vmem [thread:$0]  %s147, 256, %s149, [#allocation6], 128, 128, 8
        $region16: #{tpu_custom_call.1} parent=11 // pred_fallthru
          _
        // Predicated region
        $region17: #{tpu_custom_call.1} parent=11 // pred_check
          %p155 = pneg %p98
        $region18: #{tpu_custom_call.1} parent=11 // pred_check_branch
          %157 = sbr.rel (%p155) target = $region20
        $region19: #{tpu_custom_call.1} parent=11 // pred_region
          _
        $region20: #{tpu_custom_call.1} parent=11 // pred_fallthru
          _
      $region12: #{tpu_custom_call.1} parent=5 // pred_fallthru
        _
      %p158 = scmp.lt.s32.totalorder %s16, 2
      // Predicated region
      $region21: #{tpu_custom_call.1} parent=5 // pred_check
        %p159 = pneg %p158
      $region22: #{tpu_custom_call.1} parent=5 // pred_check_branch
        %161 = sbr.rel (%p159) target = $region24
      $region23: #{tpu_custom_call.1} parent=5 // pred_region
        // Predicated region
        $region25: #{tpu_custom_call.1} parent=23 // pred_check
          %p162 = pneg %p50
        $region26: #{tpu_custom_call.1} parent=23 // pred_check_branch
          %164 = sbr.rel (%p162) target = $region28
        $region27: #{tpu_custom_call.1} parent=23 // pred_region
          %s165 = sand.u32 %s40, 1
          %s166 = scalar_lea.sflag [#allocation3], %s165
          %s167 = sand.u32 %s40, 1
          %s168 = smul.addr %s167, 128
          %s169 = scalar_lea.vmem [#allocation2], %s168
          %s170 = smul.u32 8, %s24
          %172 = vsyncadd %s166, 0
          %s173 = smul.addr %s170, 2
          %s174 = smul.addr %s23, 16
          %s175 = sadd.s32 %s173, %s174
          %s176 = smul.addr %s175, 8
          %s177 = scalar_lea.hbm %s0, %s176
          %s178 = sshll.u32 %s177, 4
          %s179 = int_to_ptr.hbm [resolvable:$true] %s178
          %s180 = sshll.u32 %s169, 4
          %s181 = int_to_ptr.vmem [resolvable:$true] %s180
          %186 = dma.hbm_to_vmem [thread:$0]  %s179, 2048, %s181, %s166, 128, 128, 8
        $region28: #{tpu_custom_call.1} parent=23 // pred_fallthru
          _
      $region24: #{tpu_custom_call.1} parent=5 // pred_fallthru
        _
      %p187 = scmp.le.s32.totalorder 1, %s16
      %p188 = scmp.lt.s32.totalorder %s16, 3
      %p189 = pnand %p187, %p188
      %p190 = pneg %p189
      // Predicated region
      $region29: #{tpu_custom_call.1} parent=5 // pred_check
        _
      $region30: #{tpu_custom_call.1} parent=5 // pred_check_branch
        %192 = sbr.rel (%p189) target = $region32
      $region31: #{tpu_custom_call.1} parent=5 // pred_region
        %s193 = ssub.s32 %s16, 1
        %s194 = sand.u32 %s43, 1
        %s195 = scalar_lea.sflag [#allocation3], %s194
        %s196 = sand.u32 %s43, 1
        %s197 = smul.addr %s196, 128
        %s198 = scalar_lea.vmem [#allocation2], %s197
        // Predicated region
        $region33: #{tpu_custom_call.1} parent=31 // pred_check
          %p199 = pneg %p56
        $region34: #{tpu_custom_call.1} parent=31 // pred_check_branch
          %201 = sbr.rel (%p199) target = $region36
        $region35: #{tpu_custom_call.1} parent=31 // pred_region
          %203 = dma.done %s195, 2048
        $region36: #{tpu_custom_call.1} parent=31 // pred_fallthru
          _
        // Predicated region
        $region37: #{tpu_custom_call.1} parent=31 // pred_check
          %p204 = pneg %p77
        $region38: #{tpu_custom_call.1} parent=31 // pred_check_branch
          %206 = sbr.rel (%p204) target = $region40
        $region39: #{tpu_custom_call.1} parent=31 // pred_region
          %208 = dma.done [#allocation6], 256
        $region40: #{tpu_custom_call.1} parent=31 // pred_fallthru
          _
        %s209 = sand.u32 %s43, 1
        %s210 = scalar_lea.sflag [#allocation3], %s209
        %s211 = sand.u32 %s43, 1
        %s212 = smul.addr %s211, 128
        %s213 = scalar_lea.vmem [#allocation2], %s212
        %p214 = pneg %p56
        %p215 = pneg %p53
        %p216 = pneg %p77
        %p217 = pneg %p74
        %p218 = pneg %p98
        %p219 = pneg %p95
        %p220 = pneg %p126
        %p221 = pneg %p123
        %s222 = sand.u32 %s113, 1
        %s223 = scalar_lea.sflag [#allocation4], %s222
        %s224 = sand.u32 %s113, 1
        %s225 = smul.addr %s224, 64
        %s226 = scalar_lea.vmem [#allocation7], %s225
        %s227 = smul.u32 8, %s26
        %s228 = smul.u32 8, %s26
        %v229 = vld [vmem:[%s198] sm:$0xff]
        %v230 = vld [vmem:[%s198 + $0x8] sm:$0xff]
        %v231 = vld [vmem:[%s198 + $0x10] sm:$0xff]
        %v232 = vld [vmem:[%s198 + $0x18] sm:$0xff]
        %v233 = vld [vmem:[%s198 + $0x20] sm:$0xff]
        %v234 = vld [vmem:[%s198 + $0x28] sm:$0xff]
        %v235 = vld [vmem:[%s198 + $0x30] sm:$0xff]
        %v236 = vld [vmem:[%s198 + $0x38] sm:$0xff]
        %v237 = vld [vmem:[%s198 + $0x40] sm:$0xff]
        %v238 = vld [vmem:[%s198 + $0x48] sm:$0xff]
        %v239 = vld [vmem:[%s198 + $0x50] sm:$0xff]
        %v240 = vld [vmem:[%s198 + $0x58] sm:$0xff]
        %v241 = vld [vmem:[%s198 + $0x60] sm:$0xff]
        %v242 = vld [vmem:[%s198 + $0x68] sm:$0xff]
        %v243 = vld [vmem:[%s198 + $0x70] sm:$0xff]
        %v244 = vld [vmem:[%s198 + $0x78] sm:$0xff]
        %vm245 = vcmask 64512
        %v246 = vsel %vm245, %v229, 0.0
        %247 = vadd.xlane.f32.xlu0 %v246
        %v248 = vpop.xlane.xlu0 %247
        %v249 = vsel %vm245, %v231, 0.0
        %250 = vadd.xlane.f32.xlu0 %v249
        %v251 = vpop.xlane.xlu0 %250
        %v252 = vsel %vm245, %v233, 0.0
        %253 = vadd.xlane.f32.xlu0 %v252
        %v254 = vpop.xlane.xlu0 %253
        %v255 = vsel %vm245, %v235, 0.0
        %256 = vadd.xlane.f32.xlu0 %v255
        %v257 = vpop.xlane.xlu0 %256
        %v258 = vsel %vm245, %v237, 0.0
        %259 = vadd.xlane.f32.xlu0 %v258
        %v260 = vpop.xlane.xlu0 %259
        %v261 = vsel %vm245, %v239, 0.0
        %262 = vadd.xlane.f32.xlu0 %v261
        %v263 = vpop.xlane.xlu0 %262
        %v264 = vsel %vm245, %v241, 0.0
        %265 = vadd.xlane.f32.xlu0 %v264
        %v266 = vpop.xlane.xlu0 %265
        %v267 = vsel %vm245, %v243, 0.0
        %268 = vadd.xlane.f32.xlu0 %v267
        %v269 = vpop.xlane.xlu0 %268
        %v270 = vadd.f32 %v248, 0.0
        %v271 = vadd.f32 %v251, 0.0
        %v272 = vadd.f32 %v254, 0.0
        %v273 = vadd.f32 %v257, 0.0
        %v274 = vadd.f32 %v260, 0.0
        %v275 = vadd.f32 %v263, 0.0
        %v276 = vadd.f32 %v266, 0.0
        %v277 = vadd.f32 %v269, 0.0
        %v278 = vsel %vm245, %v230, 0.0
        %279 = vadd.xlane.f32.xlu0 %v278
        %v280 = vpop.xlane.xlu0 %279
        %v281 = vsel %vm245, %v232, 0.0
        %282 = vadd.xlane.f32.xlu0 %v281
        %v283 = vpop.xlane.xlu0 %282
        %v284 = vsel %vm245, %v234, 0.0
        %285 = vadd.xlane.f32.xlu0 %v284
        %v286 = vpop.xlane.xlu0 %285
        %v287 = vsel %vm245, %v236, 0.0
        %288 = vadd.xlane.f32.xlu0 %v287
        %v289 = vpop.xlane.xlu0 %288
        %v290 = vsel %vm245, %v238, 0.0
        %291 = vadd.xlane.f32.xlu0 %v290
        %v292 = vpop.xlane.xlu0 %291
        %v293 = vsel %vm245, %v240, 0.0
        %294 = vadd.xlane.f32.xlu0 %v293
        %v295 = vpop.xlane.xlu0 %294
        %v296 = vsel %vm245, %v242, 0.0
        %297 = vadd.xlane.f32.xlu0 %v296
        %v298 = vpop.xlane.xlu0 %297
        %v299 = vsel %vm245, %v244, 0.0
        %300 = vadd.xlane.f32.xlu0 %v299
        %v301 = vpop.xlane.xlu0 %300
        %v302 = vadd.f32 %v270, %v280
        %v303 = vadd.f32 %v271, %v283
        %v304 = vadd.f32 %v272, %v286
        %v305 = vadd.f32 %v273, %v289
        %v306 = vadd.f32 %v274, %v292
        %v307 = vadd.f32 %v275, %v295
        %v308 = vadd.f32 %v276, %v298
        %v309 = vadd.f32 %v277, %v301
        %v310 = vmul.f32 %v302, 0.0625
        %v311 = vmul.f32 %v303, 0.0625
        %v312 = vmul.f32 %v304, 0.0625
        %v313 = vmul.f32 %v305, 0.0625
        %v314 = vmul.f32 %v306, 0.0625
        %v315 = vmul.f32 %v307, 0.0625
        %v316 = vmul.f32 %v308, 0.0625
        %v317 = vmul.f32 %v309, 0.0625
        %v318 = vsub.f32 %v229, %v310
        %v319 = vsub.f32 %v231, %v311
        %v320 = vsub.f32 %v233, %v312
        %v321 = vsub.f32 %v235, %v313
        %v322 = vsub.f32 %v237, %v314
        %v323 = vsub.f32 %v239, %v315
        %v324 = vsub.f32 %v241, %v316
        %v325 = vsub.f32 %v243, %v317
        %v326 = vsub.f32 %v230, %v310
        %v327 = vsub.f32 %v232, %v311
        %v328 = vsub.f32 %v234, %v312
        %v329 = vsub.f32 %v236, %v313
        %v330 = vsub.f32 %v238, %v314
        %v331 = vsub.f32 %v240, %v315
        %v332 = vsub.f32 %v242, %v316
        %v333 = vsub.f32 %v244, %v317
        %v334 = vmul.f32 %v318, %v318
        %v335 = vmul.f32 %v319, %v319
        %v336 = vmul.f32 %v320, %v320
        %v337 = vmul.f32 %v321, %v321
        %v338 = vmul.f32 %v322, %v322
        %v339 = vmul.f32 %v323, %v323
        %v340 = vmul.f32 %v324, %v324
        %v341 = vmul.f32 %v325, %v325
        %v342 = vsel %vm245, %v334, 0.0
        %343 = vadd.xlane.f32.xlu0 %v342
        %v344 = vpop.xlane.xlu0 %343
        %v345 = vsel %vm245, %v335, 0.0
        %346 = vadd.xlane.f32.xlu0 %v345
        %v347 = vpop.xlane.xlu0 %346
        %v348 = vsel %vm245, %v336, 0.0
        %349 = vadd.xlane.f32.xlu0 %v348
        %v350 = vpop.xlane.xlu0 %349
        %v351 = vsel %vm245, %v337, 0.0
        %352 = vadd.xlane.f32.xlu0 %v351
        %v353 = vpop.xlane.xlu0 %352
        %v354 = vsel %vm245, %v338, 0.0
        %355 = vadd.xlane.f32.xlu0 %v354
        %v356 = vpop.xlane.xlu0 %355
        %v357 = vsel %vm245, %v339, 0.0
        %358 = vadd.xlane.f32.xlu0 %v357
        %v359 = vpop.xlane.xlu0 %358
        %v360 = vsel %vm245, %v340, 0.0
        %361 = vadd.xlane.f32.xlu0 %v360
        %v362 = vpop.xlane.xlu0 %361
        %v363 = vsel %vm245, %v341, 0.0
        %364 = vadd.xlane.f32.xlu0 %v363
        %v365 = vpop.xlane.xlu0 %364
        %v366 = vadd.f32 %v344, 0.0
        %v367 = vadd.f32 %v347, 0.0
        %v368 = vadd.f32 %v350, 0.0
        %v369 = vadd.f32 %v353, 0.0
        %v370 = vadd.f32 %v356, 0.0
        %v371 = vadd.f32 %v359, 0.0
        %v372 = vadd.f32 %v362, 0.0
        %v373 = vadd.f32 %v365, 0.0
        %v374 = vmul.f32 %v326, %v326
        %v375 = vmul.f32 %v327, %v327
        %v376 = vmul.f32 %v328, %v328
        %v377 = vmul.f32 %v329, %v329
        %v378 = vmul.f32 %v330, %v330
        %v379 = vmul.f32 %v331, %v331
        %v380 = vmul.f32 %v332, %v332
        %v381 = vmul.f32 %v333, %v333
        %v382 = vsel %vm245, %v374, 0.0
        %383 = vadd.xlane.f32.xlu0 %v382
        %v384 = vpop.xlane.xlu0 %383
        %v385 = vsel %vm245, %v375, 0.0
        %386 = vadd.xlane.f32.xlu0 %v385
        %v387 = vpop.xlane.xlu0 %386
        %v388 = vsel %vm245, %v376, 0.0
        %389 = vadd.xlane.f32.xlu0 %v388
        %v390 = vpop.xlane.xlu0 %389
        %v391 = vsel %vm245, %v377, 0.0
        %392 = vadd.xlane.f32.xlu0 %v391
        %v393 = vpop.xlane.xlu0 %392
        %v394 = vsel %vm245, %v378, 0.0
        %395 = vadd.xlane.f32.xlu0 %v394
        %v396 = vpop.xlane.xlu0 %395
        %v397 = vsel %vm245, %v379, 0.0
        %398 = vadd.xlane.f32.xlu0 %v397
        %v399 = vpop.xlane.xlu0 %398
        %v400 = vsel %vm245, %v380, 0.0
        %401 = vadd.xlane.f32.xlu0 %v400
        %v402 = vpop.xlane.xlu0 %401
        %v403 = vsel %vm245, %v381, 0.0
        %404 = vadd.xlane.f32.xlu0 %v403
        %v405 = vpop.xlane.xlu0 %404
        %v406 = vadd.f32 %v366, %v384
        %v407 = vadd.f32 %v367, %v387
        %v408 = vadd.f32 %v368, %v390
        %v409 = vadd.f32 %v369, %v393
        %v410 = vadd.f32 %v370, %v396
        %v411 = vadd.f32 %v371, %v399
        %v412 = vadd.f32 %v372, %v402
        %v413 = vadd.f32 %v373, %v405
        %v414 = vmul.f32 %v406, 0.0625
        %v415 = vmul.f32 %v407, 0.0625
        %v416 = vmul.f32 %v408, 0.0625
        %v417 = vmul.f32 %v409, 0.0625
        %v418 = vmul.f32 %v410, 0.0625
        %v419 = vmul.f32 %v411, 0.0625
        %v420 = vmul.f32 %v412, 0.0625
        %v421 = vmul.f32 %v413, 0.0625
        %v422 = vadd.f32 %v414, 1e-05
        %v423 = vadd.f32 %v415, 1e-05
        %v424 = vadd.f32 %v416, 1e-05
        %v425 = vadd.f32 %v417, 1e-05
        %v426 = vadd.f32 %v418, 1e-05
        %v427 = vadd.f32 %v419, 1e-05
        %v428 = vadd.f32 %v420, 1e-05
        %v429 = vadd.f32 %v421, 1e-05
        %v430 = vrsqrt.pop %v422
        %v431 = vmul.f32 %v430, %v422
        %v432 = vmul.f32 %v431, %v430
        %v433 = vmul.f32 0.5, %v432
        %v434 = vsub.f32 1.5, %v433
        %v435 = vmul.f32 %v430, %v434
        %vm436 = vweird.f32 %v422
        %vm437 = vweird.f32 %v430
        %vm438 = vmor %vm436, %vm437
        %v439 = vsel %vm438, %v430, %v435
        %v440 = vrsqrt.pop %v423
        %v441 = vmul.f32 %v440, %v423
        %v442 = vmul.f32 %v441, %v440
        %v443 = vmul.f32 0.5, %v442
        %v444 = vsub.f32 1.5, %v443
        %v445 = vmul.f32 %v440, %v444
        %vm446 = vweird.f32 %v423
        %vm447 = vweird.f32 %v440
        %vm448 = vmor %vm446, %vm447
        %v449 = vsel %vm448, %v440, %v445
        %v450 = vrsqrt.pop %v424
        %v451 = vmul.f32 %v450, %v424
        %v452 = vmul.f32 %v451, %v450
        %v453 = vmul.f32 0.5, %v452
        %v454 = vsub.f32 1.5, %v453
        %v455 = vmul.f32 %v450, %v454
        %vm456 = vweird.f32 %v424
        %vm457 = vweird.f32 %v450
        %vm458 = vmor %vm456, %vm457
        %v459 = vsel %vm458, %v450, %v455
        %v460 = vrsqrt.pop %v425
        %v461 = vmul.f32 %v460, %v425
        %v462 = vmul.f32 %v461, %v460
        %v463 = vmul.f32 0.5, %v462
        %v464 = vsub.f32 1.5, %v463
        %v465 = vmul.f32 %v460, %v464
        %vm466 = vweird.f32 %v425
        %vm467 = vweird.f32 %v460
        %vm468 = vmor %vm466, %vm467
        %v469 = vsel %vm468, %v460, %v465
        %v470 = vrsqrt.pop %v426
        %v471 = vmul.f32 %v470, %v426
        %v472 = vmul.f32 %v471, %v470
        %v473 = vmul.f32 0.5, %v472
        %v474 = vsub.f32 1.5, %v473
        %v475 = vmul.f32 %v470, %v474
        %vm476 = vweird.f32 %v426
        %vm477 = vweird.f32 %v470
        %vm478 = vmor %vm476, %vm477
        %v479 = vsel %vm478, %v470, %v475
        %v480 = vrsqrt.pop %v427
        %v481 = vmul.f32 %v480, %v427
        %v482 = vmul.f32 %v481, %v480
        %v483 = vmul.f32 0.5, %v482
        %v484 = vsub.f32 1.5, %v483
        %v485 = vmul.f32 %v480, %v484
        %vm486 = vweird.f32 %v427
        %vm487 = vweird.f32 %v480
        %vm488 = vmor %vm486, %vm487
        %v489 = vsel %vm488, %v480, %v485
        %v490 = vrsqrt.pop %v428
        %v491 = vmul.f32 %v490, %v428
        %v492 = vmul.f32 %v491, %v490
        %v493 = vmul.f32 0.5, %v492
        %v494 = vsub.f32 1.5, %v493
        %v495 = vmul.f32 %v490, %v494
        %vm496 = vweird.f32 %v428
        %vm497 = vweird.f32 %v490
        %vm498 = vmor %vm496, %vm497
        %v499 = vsel %vm498, %v490, %v495
        %v500 = vrsqrt.pop %v429
        %v501 = vmul.f32 %v500, %v429
        %v502 = vmul.f32 %v501, %v500
        %v503 = vmul.f32 0.5, %v502
        %v504 = vsub.f32 1.5, %v503
        %v505 = vmul.f32 %v500, %v504
        %vm506 = vweird.f32 %v429
        %vm507 = vweird.f32 %v500
        %vm508 = vmor %vm506, %vm507
        %v509 = vsel %vm508, %v500, %v505
        %v510 = vld [vmem:[#allocation5] sm:$0xff]
        %v511 = vld [vmem:[#allocation5 + $0x8] sm:$0xff]
        %v512 = vmul.f32 %v318, %v439
        %v513 = vmul.f32 %v319, %v449
        %v514 = vmul.f32 %v320, %v459
        %v515 = vmul.f32 %v321, %v469
        %v516 = vmul.f32 %v322, %v479
        %v517 = vmul.f32 %v323, %v489
        %v518 = vmul.f32 %v324, %v499
        %v519 = vmul.f32 %v325, %v509
        %v520 = vmul.f32 %v326, %v439
        %v521 = vmul.f32 %v327, %v449
        %v522 = vmul.f32 %v328, %v459
        %v523 = vmul.f32 %v329, %v469
        %v524 = vmul.f32 %v330, %v479
        %v525 = vmul.f32 %v331, %v489
        %v526 = vmul.f32 %v332, %v499
        %v527 = vmul.f32 %v333, %v509
        %v529 = vsel %vm245, %v520, 0
        %v532 = vsel %vm245, %v521, 0
        %v535 = vsel %vm245, %v522, 0
        %v538 = vsel %vm245, %v523, 0
        %v541 = vsel %vm245, %v524, 0
        %v544 = vsel %vm245, %v525, 0
        %v547 = vsel %vm245, %v526, 0
        %v550 = vsel %vm245, %v527, 0
        %552 = vmatpush.msra.mxu0 0.0
        %553 = vmatpush.msra.mxu0 0.0
        %554 = vmatpush.msra.mxu0 0.0
        %555 = vmatpush.msra.mxu0 0.0
        %556 = vmatpush.msra.mxu0 0.0
        %557 = vmatpush.msra.mxu0 0.0
        %558 = vmatpush.msra.mxu0 0.0
        %559 = vmatpush.msra.mxu0 0.0
        %560 = vmatpush.msra.mxu0 0.0
        %561 = vmatpush.msra.mxu0 0.0
        %562 = vmatpush.msra.mxu0 0.0
        %563 = vmatpush.msra.mxu0 0.0
        %564 = vmatpush.msra.mxu0 0.0
        %565 = vmatpush.msra.mxu0 0.0
        %566 = vmatpush.msra.mxu0 0.0
        %567 = vmatpush.msra.mxu0 %v511
        %568 = vmatmul.f32.gmra.mxu0 %v529
        %v569 = vpop.f32.mrf.mxu0
        %v570 = vadd.f32 0.0, %v569
        %571 = vmatmul.f32.gmra.mxu0 %v532
        %v572 = vpop.f32.mrf.mxu0
        %v573 = vadd.f32 0.0, %v572
        %574 = vmatmul.f32.gmra.mxu0 %v535
        %v575 = vpop.f32.mrf.mxu0
        %v576 = vadd.f32 0.0, %v575
        %577 = vmatmul.f32.gmra.mxu0 %v538
        %v578 = vpop.f32.mrf.mxu0
        %v579 = vadd.f32 0.0, %v578
        %580 = vmatmul.f32.gmra.mxu0 %v541
        %v581 = vpop.f32.mrf.mxu0
        %v582 = vadd.f32 0.0, %v581
        %583 = vmatmul.f32.gmra.mxu0 %v544
        %v584 = vpop.f32.mrf.mxu0
        %v585 = vadd.f32 0.0, %v584
        %586 = vmatmul.f32.gmra.mxu0 %v547
        %v587 = vpop.f32.mrf.mxu0
        %v588 = vadd.f32 0.0, %v587
        %589 = vmatmul.f32.gmra.mxu0 %v550
        %v590 = vpop.f32.mrf.mxu0
        %v591 = vadd.f32 0.0, %v590
        %592 = vdwg.mxu0
        %v594 = vsel %vm245, %v512, 0
        %v597 = vsel %vm245, %v513, 0
        %v600 = vsel %vm245, %v514, 0
        %v603 = vsel %vm245, %v515, 0
        %v606 = vsel %vm245, %v516, 0
        %v609 = vsel %vm245, %v517, 0
        %v612 = vsel %vm245, %v518, 0
        %v615 = vsel %vm245, %v519, 0
        %617 = vmatpush.msra.mxu0 0.0
        %618 = vmatpush.msra.mxu0 0.0
        %619 = vmatpush.msra.mxu0 0.0
        %620 = vmatpush.msra.mxu0 0.0
        %621 = vmatpush.msra.mxu0 0.0
        %622 = vmatpush.msra.mxu0 0.0
        %623 = vmatpush.msra.mxu0 0.0
        %624 = vmatpush.msra.mxu0 0.0
        %625 = vmatpush.msra.mxu0 0.0
        %626 = vmatpush.msra.mxu0 0.0
        %627 = vmatpush.msra.mxu0 0.0
        %628 = vmatpush.msra.mxu0 0.0
        %629 = vmatpush.msra.mxu0 0.0
        %630 = vmatpush.msra.mxu0 0.0
        %631 = vmatpush.msra.mxu0 0.0
        %632 = vmatpush.msra.mxu0 %v510
        %633 = vmatmul.f32.gmra.mxu0 %v594
        %v634 = vpop.f32.mrf.mxu0
        %v635 = vadd.f32 %v570, %v634
        %636 = vmatmul.f32.gmra.mxu0 %v597
        %v637 = vpop.f32.mrf.mxu0
        %v638 = vadd.f32 %v573, %v637
        %639 = vmatmul.f32.gmra.mxu0 %v600
        %v640 = vpop.f32.mrf.mxu0
        %v641 = vadd.f32 %v576, %v640
        %642 = vmatmul.f32.gmra.mxu0 %v603
        %v643 = vpop.f32.mrf.mxu0
        %v644 = vadd.f32 %v579, %v643
        %645 = vmatmul.f32.gmra.mxu0 %v606
        %v646 = vpop.f32.mrf.mxu0
        %v647 = vadd.f32 %v582, %v646
        %648 = vmatmul.f32.gmra.mxu0 %v609
        %v649 = vpop.f32.mrf.mxu0
        %v650 = vadd.f32 %v585, %v649
        %651 = vmatmul.f32.gmra.mxu0 %v612
        %v652 = vpop.f32.mrf.mxu0
        %v653 = vadd.f32 %v588, %v652
        %654 = vmatmul.f32.gmra.mxu0 %v615
        %v655 = vpop.f32.mrf.mxu0
        %v656 = vadd.f32 %v591, %v655
        %657 = vdwg.mxu0
        %v658 = vld [vmem:[%s2] sm:$0x1]
        %v660 = vperm.slane %v658, 0
        %v662 = vadd.f32 %v635, %v660
        %v663 = vadd.f32 %v638, %v660
        %v664 = vadd.f32 %v641, %v660
        %v665 = vadd.f32 %v644, %v660
        %v666 = vadd.f32 %v647, %v660
        %v667 = vadd.f32 %v650, %v660
        %v668 = vadd.f32 %v653, %v660
        %v669 = vadd.f32 %v656, %v660
        %670 = vst [vmem:[%s226] sm:$0xff] %v662
        %671 = vst [vmem:[%s226 + $0x8] sm:$0xff] %v663
        %672 = vst [vmem:[%s226 + $0x10] sm:$0xff] %v664
        %673 = vst [vmem:[%s226 + $0x18] sm:$0xff] %v665
        %674 = vst [vmem:[%s226 + $0x20] sm:$0xff] %v666
        %675 = vst [vmem:[%s226 + $0x28] sm:$0xff] %v667
        %676 = vst [vmem:[%s226 + $0x30] sm:$0xff] %v668
        %677 = vst [vmem:[%s226 + $0x38] sm:$0xff] %v669
        %s678 = sand.u32 %s113, 1
        %s679 = scalar_lea.sflag [#allocation4], %s678
        %s680 = sand.u32 %s113, 1
        %s681 = smul.addr %s680, 64
        %s682 = scalar_lea.vmem [#allocation7], %s681
        // Predicated region
        $region41: #{tpu_custom_call.1} parent=31 // pred_check
          %p683 = pneg %p123
        $region42: #{tpu_custom_call.1} parent=31 // pred_check_branch
          %685 = sbr.rel (%p683) target = $region44
        $region43: #{tpu_custom_call.1} parent=31 // pred_region
          %s686 = smul.u32 8, %s26
          %688 = vsyncadd %s679, 0
          %s689 = smul.addr %s25, 8
          %s690 = sadd.s32 %s686, %s689
          %s691 = smul.addr %s690, 8
          %s692 = scalar_lea.hbm %s3, %s691
          %s693 = sshll.u32 %s682, 4
          %s694 = int_to_ptr.vmem [resolvable:$true] %s693
          %s695 = sshll.u32 %s692, 4
          %s696 = int_to_ptr.hbm [resolvable:$true] %s695
          %701 = dma.vmem_to_hbm [thread:$0]  %s694, 1024, %s696, %s679, 128, 128, 8
        $region44: #{tpu_custom_call.1} parent=31 // pred_fallthru
          _
      $region32: #{tpu_custom_call.1} parent=5 // pred_fallthru
        _
      %p702 = scmp.le.s32.totalorder 2, %s16
      // Predicated region
      $region45: #{tpu_custom_call.1} parent=5 // pred_check
        %p703 = pneg %p702
      $region46: #{tpu_custom_call.1} parent=5 // pred_check_branch
        %705 = sbr.rel (%p703) target = $region48
      $region47: #{tpu_custom_call.1} parent=5 // pred_region
        %s706 = ssub.s32 %s16, 2
        // Predicated region
        $region49: #{tpu_custom_call.1} parent=47 // pred_check
          %p707 = pneg %p129
        $region50: #{tpu_custom_call.1} parent=47 // pred_check_branch
          %709 = sbr.rel (%p707) target = $region52
        $region51: #{tpu_custom_call.1} parent=47 // pred_region
          %s710 = sand.u32 %s114, 1
          %s711 = scalar_lea.sflag [#allocation4], %s710
          %s712 = sand.u32 %s114, 1
          %s713 = smul.addr %s712, 64
          %s714 = scalar_lea.vmem [#allocation7], %s713
          %716 = dma.done %s711, 1024
        $region52: #{tpu_custom_call.1} parent=47 // pred_fallthru
          _
      $region48: #{tpu_custom_call.1} parent=5 // pred_fallthru
        _
    $region6: #{tpu_custom_call.1} parent=1 // loop_footer
      %s20 = sadd.s32 1, %s16
    $region7: #{tpu_custom_call.1} parent=1 // loop_footer_branch
      %15 = sbr.rel target = $region3
    $region8: #{tpu_custom_call.1} parent=1 // loop_exit
      _
    %717 = vsyncpa [#allocation3], 1
    %s718 = scalar_lea.sflag [#allocation3], 1
    %719 = vsyncpa %s718, 1
    %720 = vsyncpa [#allocation6], 1
    %721 = vsyncpa [#allocation4], 1
    %s722 = scalar_lea.sflag [#allocation4], 1
    %723 = vsyncpa %s722, 1

</llo_original>
